<compile_context>
chip_gen: v5e
topology: v5e:2x2
jax: 0.10.0
libtpu: 0.0.40
codegen_flags: <defaults>
</compile_context>

<pallas_src>
import functools

import jax
import jax.numpy as jnp
from jax import lax
from jax.experimental import pallas as pl
from jax.experimental.pallas import tpu as pltpu

_LANES = 128
_SUBLANES = 8


def _layernorm_kernel(x_ref, w_ref, b_ref, o_ref, *, eps):
    # x_ref / o_ref: (1, C, ...spatial...);  w_ref / b_ref: (C, 1[, 1]).
    x = x_ref[0].astype(jnp.float32)                      # (C, ...)
    inv_c = jnp.float32(1.0 / x.shape[0])
    # Two-pass (mean, then centered variance) over the channel axis: matches
    # the PyTorch module exactly (biased variance, eps inside the sqrt) and
    # avoids E[x^2]-E[x]^2 cancellation at small C.
    mean = jnp.sum(x, axis=0, keepdims=True) * inv_c
    xc = x - mean
    del x, mean                                           # one live f32 temp
    var = jnp.sum(xc * xc, axis=0, keepdims=True) * inv_c
    inv_std = lax.rsqrt(var + eps)                        # EUP rsqrt
    w = w_ref[...].astype(jnp.float32)                    # (C, 1[, 1])
    b = b_ref[...].astype(jnp.float32)
    o_ref[0] = (xc * (inv_std * w) + b).astype(o_ref.dtype)


def _vmem_limit_bytes():
    """Generation-aware scoped VMEM limit with headroom for compiler scratch."""
    try:
        cap = int(pltpu.get_tpu_info().vmem_capacity_bytes)
    except Exception:  # pragma: no cover - conservative (v7x-sized) fallback
        cap = 64 * 1024 * 1024
    # ~75% of physical, never above 96 MiB: 96 MiB on v5e/v6e, 48 MiB on v7x.
    return max(min(cap * 3 // 4, 96 * 1024 * 1024), 16 * 1024 * 1024)


def _max_spatial_elems(c, itemsize, vmem_limit):
    """Largest flattened-spatial tile (elements per channel) for one block.

    Per grid step footprint: 2x double-buffered input blocks + 2x output
    blocks in x.dtype, plus ~2 blocks of f32 intermediates (the kernel always
    computes in f32).  Use half the scoped limit so spills / internal scratch
    have room.
    """
    per_elem_bytes = c * (4 * itemsize + 2 * 4)
    budget = vmem_limit // 2
    return max(budget // per_elem_bytes, _LANES)


def layer_norm_nchw(x, weight, bias, eps=1e-6):
    """Channel-wise LayerNorm for x of shape (B, C, H, W): matches the PyTorch
    ConvNeXt LayerNorm forward (biased variance, per-channel affine)."""
    B, C, H, W = x.shape
    HW = H * W
    itemsize = jnp.dtype(x.dtype).itemsize
    vmem_limit = _vmem_limit_bytes()
    max_elems = _max_spatial_elems(C, itemsize, vmem_limit)

    kernel = functools.partial(_layernorm_kernel, eps=eps)
    cparams = pltpu.CompilerParams(
        dimension_semantics=("parallel", "parallel"),
        vmem_limit_bytes=vmem_limit,
    )

    if HW % _LANES == 0:
        # Dense 4D layout (B, C, S, 128): lane- and sublane-dense for any C.
        S = HW // _LANES
        tile_s = max((max_elems // _LANES // _SUBLANES) * _SUBLANES, _SUBLANES)
        if B == 1 and S >= 2 * _SUBLANES:
            # Guarantee >= 2 spatial grid steps so both v7x TCs get work.
            tile_s = min(tile_s,
                         max(_SUBLANES, ((S + 1) // 2 // _SUBLANES) * _SUBLANES))
        tile_s = min(tile_s, S)  # full extent is always a legal block dim

        grid = (B, pl.cdiv(S, tile_s))
        x4 = x.reshape(B, C, S, _LANES)
        out4 = pl.pallas_call(
            kernel,
            out_shape=jax.ShapeDtypeStruct((B, C, S, _LANES), x.dtype),
            grid_spec=pltpu.PrefetchScalarGridSpec(
                num_scalar_prefetch=0,
                grid=grid,
                in_specs=[
                    pl.BlockSpec((1, C, tile_s, _LANES), lambda i, j: (i, 0, j, 0)),
                    pl.BlockSpec((C, 1, 1), lambda i, j: (0, 0, 0)),
                    pl.BlockSpec((C, 1, 1), lambda i, j: (0, 0, 0)),
                ],
                out_specs=pl.BlockSpec((1, C, tile_s, _LANES),
                                       lambda i, j: (i, 0, j, 0)),
            ),
            compiler_params=cparams,
        )(x4, weight.reshape(C, 1, 1), bias.reshape(C, 1, 1))
        return out4.reshape(B, C, H, W)

    # Fallback layout when HW is not a multiple of 128: (B, C, HW) with the
    # flattened spatial axis on lanes and C on sublanes.  Partial trailing
    # blocks via pl.cdiv — padded lanes never contaminate valid lanes (the
    # reduce only spans C) and are masked on store.
    x3 = x.reshape(B, C, HW)
    if HW <= _LANES:
        tile_hw = HW                                   # full extent is legal
    else:
        hw_cap = (HW // _LANES) * _LANES
        tile_hw = min(max((max_elems // _LANES) * _LANES, _LANES), hw_cap)
        if B == 1 and hw_cap >= 2 * _LANES:
            tile_hw = min(tile_hw, max(_LANES, (hw_cap // 2 // _LANES) * _LANES))

    grid = (B, pl.cdiv(HW, tile_hw))
    out3 = pl.pallas_call(
        kernel,
        out_shape=jax.ShapeDtypeStruct((B, C, HW), x.dtype),
        grid_spec=pltpu.PrefetchScalarGridSpec(
            num_scalar_prefetch=0,
            grid=grid,
            in_specs=[
                pl.BlockSpec((1, C, tile_hw), lambda i, j: (i, 0, j)),
                pl.BlockSpec((C, 1), lambda i, j: (0, 0)),
                pl.BlockSpec((C, 1), lambda i, j: (0, 0)),
            ],
            out_specs=pl.BlockSpec((1, C, tile_hw), lambda i, j: (i, 0, j)),
        ),
        compiler_params=cparams,
    )(x3, weight.reshape(C, 1), bias.reshape(C, 1))
    return out3.reshape(B, C, H, W)


def layer_norm_ref(x, weight, bias, eps=1e-6):
    """Pure-JAX reference matching the PyTorch module exactly."""
    u = jnp.mean(x, axis=1, keepdims=True)
    s = jnp.mean((x - u) ** 2, axis=1, keepdims=True)
    xn = (x - u) / jnp.sqrt(s + eps)
    return weight[None, :, None, None] * xn + bias[None, :, None, None]


if __name__ == "__main__":
    B, C, H, W = 2, 4, 16, 16
    key = jax.random.PRNGKey(0)
    kx, kw, kb = jax.random.split(key, 3)

    x = jax.random.normal(kx, (B, C, H, W), dtype=jnp.float32)
    # Module default init is ones / zeros; perturb so weight/bias matter.
    weight = jnp.ones((C,), jnp.float32) + 0.1 * jax.random.normal(kw, (C,))
    bias = jnp.zeros((C,), jnp.float32) + 0.1 * jax.random.normal(kb, (C,))

    out = layer_norm_nchw(x, weight, bias, eps=1e-6)
    out = jax.block_until_ready(out)

    ref = layer_norm_ref(x, weight, bias, eps=1e-6)
    assert out.shape == (B, C, H, W)
    assert jnp.allclose(out, ref, atol=1e-5, rtol=1e-5), "mismatch vs reference"

    print("KERNEL_OK")
</pallas_src>

<mosaic_0001>
module attributes {stable_mosaic.version = 11 : i64} {
  func.func @_layernorm_kernel(%arg0: i32, %arg1: i32, %arg2: memref<1x4x2x128xf32, #tpu.memory_space<vmem>>, %arg3: memref<4x1x1xf32, #tpu.memory_space<vmem>>, %arg4: memref<4x1x1xf32, #tpu.memory_space<vmem>>, %arg5: memref<1x4x2x128xf32, #tpu.memory_space<vmem>>) attributes {dimension_semantics = [#tpu.dimension_semantics<parallel>, #tpu.dimension_semantics<parallel>], iteration_bounds = array<i64: 2, 1>, scalar_prefetch = 0 : i64, scratch_operands = 0 : i64, tpu.core_type = #tpu.core_type<tc>, window_params = [{transform_indices = @transform_0, window_bounds = array<i64: 1, 4, 2, 128>}, {pipeline_mode = #tpu.pipeline_mode<synchronous>, transform_indices = @transform_1, window_bounds = array<i64: 4, 1, 1>}, {pipeline_mode = #tpu.pipeline_mode<synchronous>, transform_indices = @transform_2, window_bounds = array<i64: 4, 1, 1>}, {transform_indices = @transform_3, window_bounds = array<i64: 1, 4, 2, 128>}]} {
    %c0 = arith.constant 0 : index
    %c0_0 = arith.constant 0 : index
    %c0_1 = arith.constant 0 : index
    %c0_2 = arith.constant 0 : index
    %0 = vector.load %arg2[%c0, %c0_0, %c0_1, %c0_2] : memref<1x4x2x128xf32, #tpu.memory_space<vmem>>, vector<1x4x2x128xf32>
    %1 = vector.shape_cast %0 : vector<1x4x2x128xf32> to vector<4x2x128xf32>
    %cst = arith.constant dense<0.000000e+00> : vector<2x128xf32>
    %2 = vector.multi_reduction <add>, %1, %cst [0] : vector<4x2x128xf32> to vector<2x128xf32>
    %3 = vector.shape_cast %2 : vector<2x128xf32> to vector<1x2x128xf32>
    %cst_3 = arith.constant 2.500000e-01 : f32
    %4 = vector.broadcast %cst_3 : f32 to vector<1x2x128xf32>
    %5 = arith.mulf %3, %4 : vector<1x2x128xf32>
    %6 = vector.broadcast %5 : vector<1x2x128xf32> to vector<4x2x128xf32>
    %7 = arith.subf %1, %6 : vector<4x2x128xf32>
    %8 = arith.mulf %7, %7 : vector<4x2x128xf32>
    %cst_4 = arith.constant dense<0.000000e+00> : vector<2x128xf32>
    %9 = vector.multi_reduction <add>, %8, %cst_4 [0] : vector<4x2x128xf32> to vector<2x128xf32>
    %10 = vector.shape_cast %9 : vector<2x128xf32> to vector<1x2x128xf32>
    %cst_5 = arith.constant 2.500000e-01 : f32
    %11 = vector.broadcast %cst_5 : f32 to vector<1x2x128xf32>
    %12 = arith.mulf %10, %11 : vector<1x2x128xf32>
    %cst_6 = arith.constant 9.99999997E-7 : f32
    %13 = vector.broadcast %cst_6 : f32 to vector<1x2x128xf32>
    %14 = arith.addf %12, %13 : vector<1x2x128xf32>
    %15 = math.rsqrt %14 : vector<1x2x128xf32>
    %c0_7 = arith.constant 0 : index
    %c0_8 = arith.constant 0 : index
    %c0_9 = arith.constant 0 : index
    %16 = vector.load %arg3[%c0_7, %c0_8, %c0_9] : memref<4x1x1xf32, #tpu.memory_space<vmem>>, vector<4x1x1xf32>
    %c0_10 = arith.constant 0 : index
    %c0_11 = arith.constant 0 : index
    %c0_12 = arith.constant 0 : index
    %17 = vector.load %arg4[%c0_10, %c0_11, %c0_12] : memref<4x1x1xf32, #tpu.memory_space<vmem>>, vector<4x1x1xf32>
    %18 = vector.broadcast %15 : vector<1x2x128xf32> to vector<4x2x128xf32>
    %19 = vector.broadcast %16 : vector<4x1x1xf32> to vector<4x2x128xf32>
    %20 = arith.mulf %18, %19 : vector<4x2x128xf32>
    %21 = arith.mulf %7, %20 : vector<4x2x128xf32>
    %22 = vector.broadcast %17 : vector<4x1x1xf32> to vector<4x2x128xf32>
    %23 = arith.addf %21, %22 : vector<4x2x128xf32>
    %c0_13 = arith.constant 0 : index
    %c0_14 = arith.constant 0 : index
    %c0_15 = arith.constant 0 : index
    %c0_16 = arith.constant 0 : index
    %24 = vector.load %arg5[%c0_13, %c0_14, %c0_15, %c0_16] : memref<1x4x2x128xf32, #tpu.memory_space<vmem>>, vector<1x4x2x128xf32>
    %25 = vector.shape_cast %24 : vector<1x4x2x128xf32> to vector<4x2x128xf32>
    %26 = vector.shape_cast %23 : vector<4x2x128xf32> to vector<1x4x2x128xf32>
    tpu.vector_store %arg5[%c0_13, %c0_14, %c0_15, %c0_16], %26 {strides = array<i32>} : memref<1x4x2x128xf32, #tpu.memory_space<vmem>>, vector<1x4x2x128xf32>,
    return
  }
  func.func @transform_0(%arg0: i32, %arg1: i32) -> (i32, i32, i32, i32) {
    %c0_i32 = arith.constant 0 : i32
    %c0_i32_0 = arith.constant 0 : i32
    %c0_i32_1 = arith.constant 0 : i32
    return %arg0, %c0_i32, %arg1, %c0_i32_0 : i32, i32, i32, i32
  }
  func.func @transform_1(%arg0: i32, %arg1: i32) -> (i32, i32, i32) {
    %c0_i32 = arith.constant 0 : i32
    %c0_i32_0 = arith.constant 0 : i32
    %c0_i32_1 = arith.constant 0 : i32
    %c0_i32_2 = arith.constant 0 : i32
    return %c0_i32, %c0_i32_0, %c0_i32_1 : i32, i32, i32
  }
  func.func @transform_2(%arg0: i32, %arg1: i32) -> (i32, i32, i32) {
    %c0_i32 = arith.constant 0 : i32
    %c0_i32_0 = arith.constant 0 : i32
    %c0_i32_1 = arith.constant 0 : i32
    %c0_i32_2 = arith.constant 0 : i32
    return %c0_i32, %c0_i32_0, %c0_i32_1 : i32, i32, i32
  }
  func.func @transform_3(%arg0: i32, %arg1: i32) -> (i32, i32, i32, i32) {
    %c0_i32 = arith.constant 0 : i32
    %c0_i32_0 = arith.constant 0 : i32
    %c0_i32_1 = arith.constant 0 : i32
    return %arg0, %c0_i32, %arg1, %c0_i32_0 : i32, i32, i32, i32
  }
}

</mosaic_0001>

<llo_original>
// kernel: tpu_custom_call.1
$region0: #{tpu_custom_call.1}
  #allocation0 [shape = 'u32[]', space=smem, size = 0x4, offset = 0x4, fixed_abs, tag = 'smem constant byte address 0x4 - core index']
  #allocation1 [shape = 'u32[72,128]{1,0:T(1,128)}', space=vmem, size = 0x9000, scoped, tag = 'internal scratch']
  %s0 = inlined_call_operand.hbm [shape: f32[2,4,2,128], index: 0, kind: input, shape index: {}]
  %s1 = inlined_call_operand.vmem [shape: f32[4,1,1], index: 1, kind: input, shape index: {}]
  %s2 = inlined_call_operand.vmem [shape: f32[4,1,1], index: 2, kind: input, shape index: {}]
  %s3 = inlined_call_operand.hbm [shape: f32[2,4,2,128], index: 3, kind: output, shape index: {}]
  %s4 = sld [smem:[#allocation0]]
  $region49: #{tpu_custom_call.1} parent=0
    _
  %s6 = ssub.s32 1, %s4
  %s7 = scalar_select 0, %s6, %s4
  $region1: #{tpu_custom_call.1} parent=0
    #allocation2 [shape = 'u8[8192]{0}', space=vmem, size = 0x2000, scoped, tag = 'input window, operand 0']
    #allocation3 [shape = 's32[2]{0}', space=sflag, size = 0x8, scoped, tag = 'scoped memory for tpu_custom_call.1']
    #allocation4 [shape = 's32[2]{0}', space=sflag, size = 0x8, scoped, tag = 'scoped memory for tpu_custom_call.1']
    #allocation5 [shape = 'u8[8192]{0}', space=vmem, size = 0x2000, scoped, tag = 'output window, operand 0']
    %8 = vsyncpa [#allocation3], 0
    %s9 = scalar_lea.sflag [#allocation3], 1
    %10 = vsyncpa %s9, 0
    %11 = vsyncpa [#allocation4], 0
    %s12 = scalar_lea.sflag [#allocation4], 1
    %13 = vsyncpa %s12, 0
    loop: start=0, step=1, limit=4
    $region2: #{tpu_custom_call.1} parent=1 // loop_pre_header
      _
    $region3: #{tpu_custom_call.1} parent=1 // loop_header
      %s15 = sphi 0, %s19
      %p16 = scmp.ge.s32.totalorder %s15, 4
      %s22 = sphi 0, %s34
      %s23 = sphi 0, %s30
      %s24 = sphi 0, %s22
      %s25 = sphi 0, %s23
      %s26 = sphi 0, %s24
      %s27 = sphi 0, %s25
      %s39 = sphi 0, %s41
      %s42 = sphi 0, %s39
      %s43 = sphi 0, %s42
      %s59 = sphi 0, %s43
      %s63 = sphi 0, %s63
      %s65 = sphi 0, %s63
      %s66 = sphi 0, %s65
      %s80 = sphi 0, %s66
      %s84 = sphi 0, %s84
      %s86 = sphi 0, %s84
      %s87 = sphi 0, %s86
      %s101 = sphi 0, %s87
      %s109 = sphi 0, %s111
      %s112 = sphi 0, %s109
      %s113 = sphi 0, %s112
      %s129 = sphi 0, %s113
    $region4: #{tpu_custom_call.1} parent=1 // loop_header_branch
      %18 = sbr.rel (%p16) target = $region8
    $region5: #{tpu_custom_call.1} parent=1 // loop_body
      %s20 = ssub.s32 %s15, 1
      %s21 = ssub.s32 %s15, 2
      %s28 = sadd.s32 1, %s23
      %p29 = scmp.ge.s32.totalorder %s28, 1
      %s30 = scalar_select %p29, 0, %s28
      %s31 = sadd.s32 1, %s22
      %s32 = scalar_select %p29, %s31, %s22
      %p33 = scmp.ge.s32.totalorder %s32, 2
      %s34 = scalar_select %p33, 0, %s32
      %s35 = ssub.s32 %s22, %s34
      %s36 = ssub.s32 %s23, %s30
      %s37 = sor.u32 %s35, %s36
      %p38 = scmp.eq.s32.totalorder %s37, 0
      %s40 = sadd.s32 %s39, 1
      %s41 = scalar_select %p38, %s39, %s40
      %p44 = pneg %p38
      %p45 = scmp.eq.s32.totalorder %s15, 1
      %p46 = por %p44, %p45
      %p47 = scmp.ne.s32.totalorder %s39, %s42
      %p48 = scmp.eq.s32.totalorder %s15, 0
      %p49 = por %p47, %p48
      %p50 = scmp.ne.s32.totalorder %s39, %s42
      %p51 = scmp.eq.s32.totalorder %s20, 1
      %p52 = por %p50, %p51
      %p53 = scmp.ne.s32.totalorder %s42, %s43
      %p54 = scmp.eq.s32.totalorder %s20, 0
      %p55 = por %p53, %p54
      %p56 = scmp.ne.s32.totalorder %s42, %s43
      %p57 = scmp.eq.s32.totalorder %s21, 1
      %p58 = por %p56, %p57
      %p60 = scmp.ne.s32.totalorder %s43, %s59
      %p61 = scmp.eq.s32.totalorder %s21, 0
      %p62 = por %p60, %p61
      %s64 = sadd.s32 %s63, 1
      %p67 = scmp.eq.s32.totalorder %s15, 1
      %p68 = scmp.ne.s32.totalorder %s63, %s65
      %p69 = scmp.eq.s32.totalorder %s15, 0
      %p70 = por %p68, %p69
      %p71 = scmp.ne.s32.totalorder %s63, %s65
      %p72 = scmp.eq.s32.totalorder %s20, 1
      %p73 = por %p71, %p72
      %p74 = scmp.ne.s32.totalorder %s65, %s66
      %p75 = scmp.eq.s32.totalorder %s20, 0
      %p76 = por %p74, %p75
      %p77 = scmp.ne.s32.totalorder %s65, %s66
      %p78 = scmp.eq.s32.totalorder %s21, 1
      %p79 = por %p77, %p78
      %p81 = scmp.ne.s32.totalorder %s66, %s80
      %p82 = scmp.eq.s32.totalorder %s21, 0
      %p83 = por %p81, %p82
      %s85 = sadd.s32 %s84, 1
      %p88 = scmp.eq.s32.totalorder %s15, 1
      %p89 = scmp.ne.s32.totalorder %s84, %s86
      %p90 = scmp.eq.s32.totalorder %s15, 0
      %p91 = por %p89, %p90
      %p92 = scmp.ne.s32.totalorder %s84, %s86
      %p93 = scmp.eq.s32.totalorder %s20, 1
      %p94 = por %p92, %p93
      %p95 = scmp.ne.s32.totalorder %s86, %s87
      %p96 = scmp.eq.s32.totalorder %s20, 0
      %p97 = por %p95, %p96
      %p98 = scmp.ne.s32.totalorder %s86, %s87
      %p99 = scmp.eq.s32.totalorder %s21, 1
      %p100 = por %p98, %p99
      %p102 = scmp.ne.s32.totalorder %s87, %s101
      %p103 = scmp.eq.s32.totalorder %s21, 0
      %p104 = por %p102, %p103
      %s105 = ssub.s32 %s22, %s34
      %s106 = ssub.s32 %s23, %s30
      %s107 = sor.u32 %s105, %s106
      %p108 = scmp.eq.s32.totalorder %s107, 0
      %s110 = sadd.s32 %s109, 1
      %s111 = scalar_select %p108, %s109, %s110
      %p114 = pneg %p108
      %p115 = scmp.eq.s32.totalorder %s15, 1
      %p116 = por %p114, %p115
      %p117 = scmp.ne.s32.totalorder %s109, %s112
      %p118 = scmp.eq.s32.totalorder %s15, 0
      %p119 = por %p117, %p118
      %p120 = scmp.ne.s32.totalorder %s109, %s112
      %p121 = scmp.eq.s32.totalorder %s20, 1
      %p122 = por %p120, %p121
      %p123 = scmp.ne.s32.totalorder %s112, %s113
      %p124 = scmp.eq.s32.totalorder %s20, 0
      %p125 = por %p123, %p124
      %p126 = scmp.ne.s32.totalorder %s112, %s113
      %p127 = scmp.eq.s32.totalorder %s21, 1
      %p128 = por %p126, %p127
      %p130 = scmp.ne.s32.totalorder %s113, %s129
      %p131 = scmp.eq.s32.totalorder %s21, 0
      %p132 = por %p130, %p131
      %p133 = scmp.le.s32.totalorder 1, %s15
      %p134 = scmp.lt.s32.totalorder %s15, 3
      %p135 = pnand %p133, %p134
      %p136 = pneg %p135
      // Predicated region
      $region9: #{tpu_custom_call.1} parent=5 // pred_check
        _
      $region10: #{tpu_custom_call.1} parent=5 // pred_check_branch
        %138 = sbr.rel (%p135) target = $region12
      $region11: #{tpu_custom_call.1} parent=5 // pred_region
        %s139 = ssub.s32 %s15, 1
        // Predicated region
        $region13: #{tpu_custom_call.1} parent=11 // pred_check
          %p140 = pneg %p76
        $region14: #{tpu_custom_call.1} parent=11 // pred_check_branch
          %142 = sbr.rel (%p140) target = $region16
        $region15: #{tpu_custom_call.1} parent=11 // pred_region
          _
        $region16: #{tpu_custom_call.1} parent=11 // pred_fallthru
          _
        // Predicated region
        $region17: #{tpu_custom_call.1} parent=11 // pred_check
          %p143 = pneg %p97
        $region18: #{tpu_custom_call.1} parent=11 // pred_check_branch
          %145 = sbr.rel (%p143) target = $region20
        $region19: #{tpu_custom_call.1} parent=11 // pred_region
          _
        $region20: #{tpu_custom_call.1} parent=11 // pred_fallthru
          _
      $region12: #{tpu_custom_call.1} parent=5 // pred_fallthru
        _
      %p146 = scmp.lt.s32.totalorder %s15, 2
      // Predicated region
      $region21: #{tpu_custom_call.1} parent=5 // pred_check
        %p147 = pneg %p146
      $region22: #{tpu_custom_call.1} parent=5 // pred_check_branch
        %149 = sbr.rel (%p147) target = $region24
      $region23: #{tpu_custom_call.1} parent=5 // pred_region
        // Predicated region
        $region25: #{tpu_custom_call.1} parent=23 // pred_check
          %p150 = pneg %p49
        $region26: #{tpu_custom_call.1} parent=23 // pred_check_branch
          %152 = sbr.rel (%p150) target = $region28
        $region27: #{tpu_custom_call.1} parent=23 // pred_region
          %s153 = sand.u32 %s39, 1
          %s154 = scalar_lea.sflag [#allocation3], %s153
          %s155 = sand.u32 %s39, 1
          %s156 = smul.addr %s155, 8
          %s157 = scalar_lea.vmem [#allocation2], %s156
          %159 = vsyncadd %s154, 0
          %s160 = smul.addr %s22, 4
          %s161 = sadd.s32 %s23, %s160
          %s162 = smul.addr %s161, 2
          %s163 = scalar_lea.hbm %s0, %s162
          %s164 = sshll.u32 %s163, 4
          %s165 = int_to_ptr.hbm [resolvable:$true] %s164
          %s166 = sshll.u32 %s157, 4
          %s167 = int_to_ptr.vmem [resolvable:$true] %s166
          %172 = dma.hbm_to_vmem [thread:$0]  %s165, 128, %s167, %s154, 32, 32, 2
        $region28: #{tpu_custom_call.1} parent=23 // pred_fallthru
          _
      $region24: #{tpu_custom_call.1} parent=5 // pred_fallthru
        _
      %p173 = scmp.le.s32.totalorder 1, %s15
      %p174 = scmp.lt.s32.totalorder %s15, 3
      %p175 = pnand %p173, %p174
      %p176 = pneg %p175
      // Predicated region
      $region29: #{tpu_custom_call.1} parent=5 // pred_check
        _
      $region30: #{tpu_custom_call.1} parent=5 // pred_check_branch
        %178 = sbr.rel (%p175) target = $region32
      $region31: #{tpu_custom_call.1} parent=5 // pred_region
        %s179 = ssub.s32 %s15, 1
        %s180 = sand.u32 %s42, 1
        %s181 = scalar_lea.sflag [#allocation3], %s180
        %s182 = sand.u32 %s42, 1
        %s183 = smul.addr %s182, 8
        %s184 = scalar_lea.vmem [#allocation2], %s183
        // Predicated region
        $region33: #{tpu_custom_call.1} parent=31 // pred_check
          %p185 = pneg %p55
        $region34: #{tpu_custom_call.1} parent=31 // pred_check_branch
          %187 = sbr.rel (%p185) target = $region36
        $region35: #{tpu_custom_call.1} parent=31 // pred_region
          %189 = dma.done %s181, 128
        $region36: #{tpu_custom_call.1} parent=31 // pred_fallthru
          _
        %s190 = sand.u32 %s42, 1
        %s191 = scalar_lea.sflag [#allocation3], %s190
        %s192 = sand.u32 %s42, 1
        %s193 = smul.addr %s192, 8
        %s194 = scalar_lea.vmem [#allocation2], %s193
        %p195 = pneg %p55
        %p196 = pneg %p52
        %p197 = pneg %p76
        %p198 = pneg %p73
        %p199 = pneg %p97
        %p200 = pneg %p94
        %p201 = pneg %p125
        %p202 = pneg %p122
        %s203 = sand.u32 %s112, 1
        %s204 = scalar_lea.sflag [#allocation4], %s203
        %s205 = sand.u32 %s112, 1
        %s206 = smul.addr %s205, 8
        %s207 = scalar_lea.vmem [#allocation5], %s206
        %v208 = vld [vmem:[%s184] sm:$0x3]
        %v209 = vld [vmem:[%s184 + $0x2] sm:$0x3]
        %v210 = vld [vmem:[%s184 + $0x4] sm:$0x3]
        %v211 = vld [vmem:[%s184 + $0x6] sm:$0x3]
        %vm212 = vcmask 1041408
        %v213 = vsel %vm212, %v208, 0.0
        %v214 = vsel %vm212, %v209, 0.0
        %v215 = vadd.f32 %v213, %v214
        %v216 = vsel %vm212, %v210, 0.0
        %v217 = vadd.f32 %v215, %v216
        %v218 = vsel %vm212, %v211, 0.0
        %v219 = vadd.f32 %v217, %v218
        %v220 = vmul.f32 %v219, 0.25
        %v221 = vsub.f32 %v208, %v220
        %v222 = vsub.f32 %v209, %v220
        %v223 = vsub.f32 %v210, %v220
        %v224 = vsub.f32 %v211, %v220
        %v225 = vmul.f32 %v221, %v221
        %v226 = vmul.f32 %v222, %v222
        %v227 = vmul.f32 %v223, %v223
        %v228 = vmul.f32 %v224, %v224
        %v229 = vsel %vm212, %v225, 0.0
        %v230 = vsel %vm212, %v226, 0.0
        %v231 = vadd.f32 %v229, %v230
        %v232 = vsel %vm212, %v227, 0.0
        %v233 = vadd.f32 %v231, %v232
        %v234 = vsel %vm212, %v228, 0.0
        %v235 = vadd.f32 %v233, %v234
        %v236 = vmul.f32 %v235, 0.25
        %v237 = vadd.f32 %v236, 1e-06
        %v238 = vrsqrt.pop %v237
        %v239 = vmul.f32 %v238, %v237
        %v240 = vmul.f32 %v239, %v238
        %v241 = vmul.f32 0.5, %v240
        %v242 = vsub.f32 1.5, %v241
        %v243 = vmul.f32 %v238, %v242
        %vm244 = vweird.f32 %v237
        %vm245 = vweird.f32 %v238
        %vm246 = vmor %vm244, %vm245
        %v247 = vsel %vm246, %v238, %v243
        %v248 = vld [vmem:[%s1] sm:$0x1]
        %v249 = vld [vmem:[%s1 + $0x1] sm:$0x1]
        %v250 = vld [vmem:[%s1 + $0x2] sm:$0x1]
        %v251 = vld [vmem:[%s1 + $0x3] sm:$0x1]
        %v252 = vld [vmem:[%s2] sm:$0x1]
        %v253 = vld [vmem:[%s2 + $0x1] sm:$0x1]
        %v254 = vld [vmem:[%s2 + $0x2] sm:$0x1]
        %v255 = vld [vmem:[%s2 + $0x3] sm:$0x1]
        %v260 = vperm.slane %v248, 0
        %v261 = vperm.slane %v249, 0
        %v262 = vperm.slane %v250, 0
        %v263 = vperm.slane %v251, 0
        %264 = vset.pattern.permute.xlu0 0
        %265 = vperm.xlu0 %264, %v260
        %v266 = vpop.permute.xlu0 %265
        %268 = vset.pattern.permute.xlu0 0
        %269 = vperm.xlu0 %268, %v261
        %v270 = vpop.permute.xlu0 %269
        %272 = vset.pattern.permute.xlu0 0
        %273 = vperm.xlu0 %272, %v262
        %v274 = vpop.permute.xlu0 %273
        %276 = vset.pattern.permute.xlu0 0
        %277 = vperm.xlu0 %276, %v263
        %v278 = vpop.permute.xlu0 %277
        %v280 = vmul.f32 %v247, %v266
        %v281 = vmul.f32 %v247, %v270
        %v282 = vmul.f32 %v247, %v274
        %v283 = vmul.f32 %v247, %v278
        %v284 = vmul.f32 %v221, %v280
        %v285 = vmul.f32 %v222, %v281
        %v286 = vmul.f32 %v223, %v282
        %v287 = vmul.f32 %v224, %v283
        %v292 = vperm.slane %v252, 0
        %v293 = vperm.slane %v253, 0
        %v294 = vperm.slane %v254, 0
        %v295 = vperm.slane %v255, 0
        %296 = vset.pattern.permute.xlu0 0
        %297 = vperm.xlu0 %296, %v292
        %v298 = vpop.permute.xlu0 %297
        %300 = vset.pattern.permute.xlu0 0
        %301 = vperm.xlu0 %300, %v293
        %v302 = vpop.permute.xlu0 %301
        %304 = vset.pattern.permute.xlu0 0
        %305 = vperm.xlu0 %304, %v294
        %v306 = vpop.permute.xlu0 %305
        %308 = vset.pattern.permute.xlu0 0
        %309 = vperm.xlu0 %308, %v295
        %v310 = vpop.permute.xlu0 %309
        %v312 = vadd.f32 %v284, %v298
        %v313 = vadd.f32 %v285, %v302
        %v314 = vadd.f32 %v286, %v306
        %v315 = vadd.f32 %v287, %v310
        %316 = vst [vmem:[%s207] sm:$0x3] %v312
        %317 = vst [vmem:[%s207 + $0x2] sm:$0x3] %v313
        %318 = vst [vmem:[%s207 + $0x4] sm:$0x3] %v314
        %319 = vst [vmem:[%s207 + $0x6] sm:$0x3] %v315
        %s320 = sand.u32 %s112, 1
        %s321 = scalar_lea.sflag [#allocation4], %s320
        %s322 = sand.u32 %s112, 1
        %s323 = smul.addr %s322, 8
        %s324 = scalar_lea.vmem [#allocation5], %s323
        // Predicated region
        $region37: #{tpu_custom_call.1} parent=31 // pred_check
          %p325 = pneg %p122
        $region38: #{tpu_custom_call.1} parent=31 // pred_check_branch
          %327 = sbr.rel (%p325) target = $region40
        $region39: #{tpu_custom_call.1} parent=31 // pred_region
          %329 = vsyncadd %s321, 0
          %s330 = smul.addr %s24, 4
          %s331 = sadd.s32 %s25, %s330
          %s332 = smul.addr %s331, 2
          %s333 = scalar_lea.hbm %s3, %s332
          %s334 = sshll.u32 %s324, 4
          %s335 = int_to_ptr.vmem [resolvable:$true] %s334
          %s336 = sshll.u32 %s333, 4
          %s337 = int_to_ptr.hbm [resolvable:$true] %s336
          %342 = dma.vmem_to_hbm [thread:$0]  %s335, 128, %s337, %s321, 32, 32, 2
        $region40: #{tpu_custom_call.1} parent=31 // pred_fallthru
          _
      $region32: #{tpu_custom_call.1} parent=5 // pred_fallthru
        _
      %p343 = scmp.le.s32.totalorder 2, %s15
      // Predicated region
      $region41: #{tpu_custom_call.1} parent=5 // pred_check
        %p344 = pneg %p343
      $region42: #{tpu_custom_call.1} parent=5 // pred_check_branch
        %346 = sbr.rel (%p344) target = $region44
      $region43: #{tpu_custom_call.1} parent=5 // pred_region
        %s347 = ssub.s32 %s15, 2
        // Predicated region
        $region45: #{tpu_custom_call.1} parent=43 // pred_check
          %p348 = pneg %p128
        $region46: #{tpu_custom_call.1} parent=43 // pred_check_branch
          %350 = sbr.rel (%p348) target = $region48
        $region47: #{tpu_custom_call.1} parent=43 // pred_region
          %s351 = sand.u32 %s113, 1
          %s352 = scalar_lea.sflag [#allocation4], %s351
          %s353 = sand.u32 %s113, 1
          %s354 = smul.addr %s353, 8
          %s355 = scalar_lea.vmem [#allocation5], %s354
          %357 = dma.done %s352, 128
        $region48: #{tpu_custom_call.1} parent=43 // pred_fallthru
          _
      $region44: #{tpu_custom_call.1} parent=5 // pred_fallthru
        _
    $region6: #{tpu_custom_call.1} parent=1 // loop_footer
      %s19 = sadd.s32 1, %s15
    $region7: #{tpu_custom_call.1} parent=1 // loop_footer_branch
      %14 = sbr.rel target = $region3
    $region8: #{tpu_custom_call.1} parent=1 // loop_exit
      _
    %358 = vsyncpa [#allocation3], 1
    %s359 = scalar_lea.sflag [#allocation3], 1
    %360 = vsyncpa %s359, 1
    %361 = vsyncpa [#allocation4], 1
    %s362 = scalar_lea.sflag [#allocation4], 1
    %363 = vsyncpa %s362, 1

</llo_original>
